<compile_context>
chip_gen: v7x
topology: tpu7x:2x2x1
jax: 0.10.0
libtpu: 0.0.40
codegen_flags: <defaults>
</compile_context>

<pallas_src>
import functools

import jax
import jax.numpy as jnp
from jax.experimental import pallas as pl
from jax.experimental.pallas import tpu as pltpu

EPS = 1e-5


def ln_bn_relu_kernel(x_ref, w_ref, gamma_ref, beta_ref, o_ref, acc_ref, *, inv_b):
    # Grid = (N tiles, K tiles); K (reduction over D_in) is the last axis.
    k = pl.program_id(1)

    @pl.when(k == 0)
    def _():
        acc_ref[...] = jnp.zeros_like(acc_ref)

    # Linear (bias=False because batch_norm=True): accumulate x @ W in f32.
    acc_ref[...] += jnp.dot(
        x_ref[...], w_ref[...], preferred_element_type=jnp.float32
    )

    @pl.when(k == pl.num_programs(1) - 1)
    def _():
        z = acc_ref[...]                                   # (Bp, tn) f32

        # One-pass BN stats: both cross-sublane reductions issue from the same
        # z pass.  Padded batch rows are exactly zero, so sums are unaffected;
        # inv_b is 1/true_B (biased variance, BN1d training mode).
        s = jnp.sum(z, axis=0, keepdims=True)              # (1, tn)
        sq = jnp.sum(z * z, axis=0, keepdims=True)         # (1, tn)
        mean = s * inv_b
        var = sq * inv_b - mean * mean

        # Fold gamma * inv_std (and mean) into per-feature scale/shift so the
        # per-element work is a single mul + add + max on the VPU; rsqrt runs
        # on the EUP (separate issue slot).
        scale = gamma_ref[...] * jax.lax.rsqrt(var + EPS)  # (1, tn)
        shift = beta_ref[...] - mean * scale               # (1, tn)

        y = z * scale + shift
        o_ref[...] = jnp.maximum(y, 0.0).astype(o_ref.dtype)


def _round_up(a, m):
    return ((a + m - 1) // m) * m


def ln_bn_relu(x, w_t, gamma, beta, *, tn_max=512, tk_max=2048):
    """x: (B, D_in) f32, w_t: (D_in, D_out) f32, gamma/beta: (1, D_out) f32.

    Forward of LnBnReLU(batch_norm=True, relu=True) in training mode:
    ReLU(BatchNorm1d(x @ W.T)) with biased batch statistics.
    """
    B, D_in = x.shape
    D_out = w_t.shape[1]

    # --- Batch: pad to a multiple of 8 (sublane alignment).  Padded rows are
    # zero -> BN sums unchanged; the true 1/B is closed over below.
    Bp = _round_up(B, 8)

    # --- Simple VMEM budget so tiles stay sane for large B / D.
    tk_budget = max(128, ((4 << 20) // (4 * Bp)) // 128 * 128)   # x block (x2 bufs)
    tn_budget = max(128, ((8 << 20) // (4 * Bp)) // 128 * 128)   # acc + out blocks
    tn_max = min(tn_max, tn_budget)
    tk_max = min(tk_max, tk_budget)

    # --- Lane-dense output: pad D_out to a multiple of 128 (padded columns
    # are all-zero -> z=0, gamma=beta=0 -> output 0; sliced off afterwards).
    Np = _round_up(D_out, 128)
    tn = min(Np, tn_max)
    while Np % tn:
        tn -= 128

    # --- Hold all of K in one block when it fits; only introduce a K grid
    # axis (with accumulator RMW) for large D_in.
    if D_in <= tk_max:
        Kp, tk = D_in, D_in
    else:
        tk = tk_max
        Kp = _round_up(D_in, tk)

    if Bp != B or Kp != D_in:
        x = jnp.pad(x, ((0, Bp - B), (0, Kp - D_in)))
    if Kp != D_in:
        w_t = jnp.pad(w_t, ((0, Kp - D_in), (0, 0)))
    if Np != D_out:
        w_t = jnp.pad(w_t, ((0, 0), (0, Np - D_out)))
        gamma = jnp.pad(gamma, ((0, 0), (0, Np - D_out)))
        beta = jnp.pad(beta, ((0, 0), (0, Np - D_out)))

    grid = (Np // tn, Kp // tk)

    kernel = functools.partial(ln_bn_relu_kernel, inv_b=1.0 / B)

    out = pl.pallas_call(
        kernel,
        out_shape=jax.ShapeDtypeStruct((Bp, Np), x.dtype),
        grid_spec=pltpu.PrefetchScalarGridSpec(
            num_scalar_prefetch=0,
            grid=grid,
            in_specs=[
                pl.BlockSpec((Bp, tk), lambda n, k: (0, k)),    # x: full batch
                pl.BlockSpec((tk, tn), lambda n, k: (k, n)),    # W (D_in, D_out)
                pl.BlockSpec((1, tn), lambda n, k: (0, n)),     # gamma
                pl.BlockSpec((1, tn), lambda n, k: (0, n)),     # beta
            ],
            out_specs=pl.BlockSpec((Bp, tn), lambda n, k: (0, n)),
            scratch_shapes=[pltpu.VMEM((Bp, tn), jnp.float32)],
        ),
        # D_out tiles are independent for BN -> "parallel" (megacore-shardable);
        # K is a reduction with a resident output block -> "arbitrary", last.
        compiler_params=pltpu.CompilerParams(
            dimension_semantics=("parallel", "arbitrary"),
            vmem_limit_bytes=64 * 1024 * 1024,
        ),
    )(x, w_t, gamma, beta)

    return out[:B, :D_out]


def reference(x, w_t, gamma, beta):
    z = x @ w_t
    mean = jnp.mean(z, axis=0, keepdims=True)
    var = jnp.mean((z - mean) ** 2, axis=0, keepdims=True)
    y = gamma * (z - mean) / jnp.sqrt(var + EPS) + beta
    return jnp.maximum(y, 0.0)


def _make_inputs(key, B, D_in, D_out):
    kx, kw = jax.random.split(key)
    x = jax.random.normal(kx, (B, D_in), dtype=jnp.float32)
    # nn.Linear default init: U(-1/sqrt(D_in), 1/sqrt(D_in)); bias=False since
    # batch_norm=True.  PyTorch stores (D_out, D_in); kernel uses (D_in, D_out).
    bound = 1.0 / (D_in ** 0.5)
    w = jax.random.uniform(kw, (D_out, D_in), minval=-bound, maxval=bound,
                           dtype=jnp.float32)
    # BatchNorm1d affine params default init.
    gamma = jnp.ones((1, D_out), dtype=jnp.float32)
    beta = jnp.zeros((1, D_out), dtype=jnp.float32)
    return x, w.T, gamma, beta


if __name__ == "__main__":
    key = jax.random.PRNGKey(0)
    k1, k2 = jax.random.split(key)

    # Case 1: small, single-tile grid (module-scale shapes).
    x, w_t, gamma, beta = _make_inputs(k1, B=8, D_in=32, D_out=64)
    out = jax.block_until_ready(ln_bn_relu(x, w_t, gamma, beta))
    ref = reference(x, w_t, gamma, beta)
    assert out.shape == (8, 64)
    assert jnp.allclose(out, ref, atol=1e-4, rtol=1e-4), "mismatch (case 1)"

    # Case 2: exercises multi-tile N and K grid plus batch/K padding paths
    # (B not a multiple of 8, D_in not a multiple of the K tile).
    x, w_t, gamma, beta = _make_inputs(k2, B=6, D_in=192, D_out=256)
    out = jax.block_until_ready(
        ln_bn_relu(x, w_t, gamma, beta, tn_max=128, tk_max=128))
    ref = reference(x, w_t, gamma, beta)
    assert out.shape == (6, 256)
    assert jnp.allclose(out, ref, atol=1e-4, rtol=1e-4), "mismatch (case 2)"

    # TODO(synk): BatchNorm1d running_mean/running_var buffer updates (a
    # training-time side effect) are not materialized; forward output matches.
    print("KERNEL_OK")
</pallas_src>

<mosaic_0001>
module attributes {stable_mosaic.version = 11 : i64} {
  func.func @ln_bn_relu_kernel(%arg0: i32, %arg1: i32, %arg2: memref<8x32xf32, #tpu.memory_space<vmem>>, %arg3: memref<32x128xf32, #tpu.memory_space<vmem>>, %arg4: memref<1x128xf32, #tpu.memory_space<vmem>>, %arg5: memref<1x128xf32, #tpu.memory_space<vmem>>, %arg6: memref<8x128xf32, #tpu.memory_space<vmem>>, %arg7: memref<8x128xf32, #tpu.memory_space<vmem>>) attributes {dimension_semantics = [#tpu.dimension_semantics<parallel>, #tpu.dimension_semantics<arbitrary>], iteration_bounds = array<i64: 1, 1>, scalar_prefetch = 0 : i64, scratch_operands = 1 : i64, tpu.core_type = #tpu.core_type<tc>, window_params = [{transform_indices = @transform_0, window_bounds = array<i64: 8, 32>}, {transform_indices = @transform_1, window_bounds = array<i64: 32, 128>}, {transform_indices = @transform_2, window_bounds = array<i64: 1, 128>}, {transform_indices = @transform_3, window_bounds = array<i64: 1, 128>}, {transform_indices = @transform_4, window_bounds = array<i64: 8, 128>}]} {
    %c0_i32 = arith.constant 0 : i32
    %0 = arith.cmpi eq, %arg1, %c0_i32 : i32
    %1 = arith.extui %0 : i1 to i32
    %c0_i32_0 = arith.constant 0 : i32
    %2 = arith.cmpi ne, %1, %c0_i32_0 : i32
    scf.if %2 {
      %cst_10 = arith.constant 0.000000e+00 : f32
      %12 = vector.broadcast %cst_10 : f32 to vector<8x128xf32>
      %c0_11 = arith.constant 0 : index
      %c0_12 = arith.constant 0 : index
      %13 = vector.load %arg7[%c0_11, %c0_12] : memref<8x128xf32, #tpu.memory_space<vmem>>, vector<8x128xf32>
      tpu.vector_store %arg7[%c0_11, %c0_12], %12 {strides = array<i32>} : memref<8x128xf32, #tpu.memory_space<vmem>>, vector<8x128xf32>,
    } else {
    }
    %c0 = arith.constant 0 : index
    %c0_1 = arith.constant 0 : index
    %3 = vector.load %arg7[%c0, %c0_1] : memref<8x128xf32, #tpu.memory_space<vmem>>, vector<8x128xf32>
    %c0_2 = arith.constant 0 : index
    %c0_3 = arith.constant 0 : index
    %4 = vector.load %arg2[%c0_2, %c0_3] : memref<8x32xf32, #tpu.memory_space<vmem>>, vector<8x32xf32>
    %c0_4 = arith.constant 0 : index
    %c0_5 = arith.constant 0 : index
    %5 = vector.load %arg3[%c0_4, %c0_5] : memref<32x128xf32, #tpu.memory_space<vmem>>, vector<32x128xf32>
    %cst = arith.constant dense<0.000000e+00> : vector<8x128xf32>
    %6 = tpu.matmul %4, %5, %cst {dimension_numbers = #tpu.dot_dimension_numbers<[1], [0], [0], [1], [0, 0, 1, 1], [], []>} : vector<8x32xf32>, vector<32x128xf32>, vector<8x128xf32> -> vector<8x128xf32>
    %7 = arith.addf %3, %6 : vector<8x128xf32>
    %c0_6 = arith.constant 0 : index
    %c0_7 = arith.constant 0 : index
    %8 = vector.load %arg7[%c0_6, %c0_7] : memref<8x128xf32, #tpu.memory_space<vmem>>, vector<8x128xf32>
    tpu.vector_store %arg7[%c0_6, %c0_7], %7 {strides = array<i32>} : memref<8x128xf32, #tpu.memory_space<vmem>>, vector<8x128xf32>,
    %c0_i32_8 = arith.constant 0 : i32
    %9 = arith.cmpi eq, %arg1, %c0_i32_8 : i32
    %10 = arith.extui %9 : i1 to i32
    %c0_i32_9 = arith.constant 0 : i32
    %11 = arith.cmpi ne, %10, %c0_i32_9 : i32
    scf.if %11 {
      %c0_10 = arith.constant 0 : index
      %c0_11 = arith.constant 0 : index
      %12 = vector.load %arg7[%c0_10, %c0_11] : memref<8x128xf32, #tpu.memory_space<vmem>>, vector<8x128xf32>
      %cst_12 = arith.constant dense<0.000000e+00> : vector<128xf32>
      %13 = vector.multi_reduction <add>, %12, %cst_12 [0] : vector<8x128xf32> to vector<128xf32>
      %14 = vector.shape_cast %13 : vector<128xf32> to vector<1x128xf32>
      %15 = arith.mulf %12, %12 : vector<8x128xf32>
      %cst_13 = arith.constant dense<0.000000e+00> : vector<128xf32>
      %16 = vector.multi_reduction <add>, %15, %cst_13 [0] : vector<8x128xf32> to vector<128xf32>
      %17 = vector.shape_cast %16 : vector<128xf32> to vector<1x128xf32>
      %cst_14 = arith.constant 1.250000e-01 : f32
      %18 = vector.broadcast %cst_14 : f32 to vector<1x128xf32>
      %19 = arith.mulf %14, %18 : vector<1x128xf32>
      %cst_15 = arith.constant 1.250000e-01 : f32
      %20 = vector.broadcast %cst_15 : f32 to vector<1x128xf32>
      %21 = arith.mulf %17, %20 : vector<1x128xf32>
      %22 = arith.mulf %19, %19 : vector<1x128xf32>
      %23 = arith.subf %21, %22 : vector<1x128xf32>
      %c0_16 = arith.constant 0 : index
      %c0_17 = arith.constant 0 : index
      %24 = vector.load %arg4[%c0_16, %c0_17] : memref<1x128xf32, #tpu.memory_space<vmem>>, vector<1x128xf32>
      %cst_18 = arith.constant 9.99999974E-6 : f32
      %25 = vector.broadcast %cst_18 : f32 to vector<1x128xf32>
      %26 = arith.addf %23, %25 : vector<1x128xf32>
      %27 = math.rsqrt %26 : vector<1x128xf32>
      %28 = arith.mulf %24, %27 : vector<1x128xf32>
      %c0_19 = arith.constant 0 : index
      %c0_20 = arith.constant 0 : index
      %29 = vector.load %arg5[%c0_19, %c0_20] : memref<1x128xf32, #tpu.memory_space<vmem>>, vector<1x128xf32>
      %30 = arith.mulf %19, %28 : vector<1x128xf32>
      %31 = arith.subf %29, %30 : vector<1x128xf32>
      %32 = vector.broadcast %28 : vector<1x128xf32> to vector<8x128xf32>
      %33 = arith.mulf %12, %32 : vector<8x128xf32>
      %34 = vector.broadcast %31 : vector<1x128xf32> to vector<8x128xf32>
      %35 = arith.addf %33, %34 : vector<8x128xf32>
      %cst_21 = arith.constant 0.000000e+00 : f32
      %36 = vector.broadcast %cst_21 : f32 to vector<8x128xf32>
      %37 = arith.maximumf %35, %36 : vector<8x128xf32>
      %c0_22 = arith.constant 0 : index
      %c0_23 = arith.constant 0 : index
      %38 = vector.load %arg6[%c0_22, %c0_23] : memref<8x128xf32, #tpu.memory_space<vmem>>, vector<8x128xf32>
      tpu.vector_store %arg6[%c0_22, %c0_23], %37 {strides = array<i32>} : memref<8x128xf32, #tpu.memory_space<vmem>>, vector<8x128xf32>,
    } else {
    }
    return
  }
  func.func @transform_0(%arg0: i32, %arg1: i32) -> (i32, i32) {
    %c0_i32 = arith.constant 0 : i32
    %c0_i32_0 = arith.constant 0 : i32
    return %c0_i32, %arg1 : i32, i32
  }
  func.func @transform_1(%arg0: i32, %arg1: i32) -> (i32, i32) {
    %c0_i32 = arith.constant 0 : i32
    return %arg1, %arg0 : i32, i32
  }
  func.func @transform_2(%arg0: i32, %arg1: i32) -> (i32, i32) {
    %c0_i32 = arith.constant 0 : i32
    %c0_i32_0 = arith.constant 0 : i32
    return %c0_i32, %arg0 : i32, i32
  }
  func.func @transform_3(%arg0: i32, %arg1: i32) -> (i32, i32) {
    %c0_i32 = arith.constant 0 : i32
    %c0_i32_0 = arith.constant 0 : i32
    return %c0_i32, %arg0 : i32, i32
  }
  func.func @transform_4(%arg0: i32, %arg1: i32) -> (i32, i32) {
    %c0_i32 = arith.constant 0 : i32
    %c0_i32_0 = arith.constant 0 : i32
    return %c0_i32, %arg0 : i32, i32
  }
}

</mosaic_0001>

<llo_original>
// kernel: tpu_custom_call.1
$region0: #{tpu_custom_call.1}
  #allocation0 [shape = 'u32[]', space=smem, size = 0x4, offset = 0x4, fixed_abs, tag = 'smem constant byte address 0x4 - core index']
  #allocation1 [shape = 'u32[144,128]{1,0:T(1,128)}', space=vmem, size = 0x12000, scoped, tag = 'internal scratch']
  #allocation2 [shape = 'f32[8,128]{1,0:T(8,128)}', space=vmem, size = 0x1000, scoped, tag = 'scratch operand']
  %s0 = inlined_call_operand.hbm [shape: f32[8,32], index: 0, kind: input, shape index: {}]
  %s1 = inlined_call_operand.hbm [shape: f32[32,128], index: 1, kind: input, shape index: {}]
  %s2 = inlined_call_operand.hbm [shape: f32[1,128], index: 2, kind: input, shape index: {}]
  %s3 = inlined_call_operand.hbm [shape: f32[1,128], index: 3, kind: input, shape index: {}]
  %s4 = inlined_call_operand.hbm [shape: f32[8,128], index: 4, kind: output, shape index: {}]
  %s5 = sld [smem:[#allocation0]]
  $region50: #{tpu_custom_call.1} parent=0
    _
  %s7 = ssub.s32 1, %s5
  %s8 = scalar_select 0, %s7, %s5
  $region1: #{tpu_custom_call.1} parent=0
    #allocation3 [shape = 'u8[4096]{0}', space=vmem, size = 0x1000, scoped, tag = 'input window, operand 0, single buffered']
    #allocation4 [shape = 's32[1]{0}', space=sflag, size = 0x4, scoped, tag = 'scoped memory for tpu_custom_call.1']
    #allocation5 [shape = 's32[1]{0}', space=sflag, size = 0x4, scoped, tag = 'scoped memory for tpu_custom_call.1']
    #allocation6 [shape = 'u8[16384]{0}', space=vmem, size = 0x4000, scoped, tag = 'input window, operand 1, single buffered']
    #allocation7 [shape = 's32[1]{0}', space=sflag, size = 0x4, scoped, tag = 'scoped memory for tpu_custom_call.1']
    #allocation8 [shape = 'u8[512]{0}', space=vmem, size = 0x400, scoped, tag = 'input window, operand 2, single buffered']
    #allocation9 [shape = 'u8[512]{0}', space=vmem, size = 0x400, scoped, tag = 'input window, operand 3, single buffered']
    #allocation10 [shape = 's32[1]{0}', space=sflag, size = 0x4, scoped, tag = 'scoped memory for tpu_custom_call.1']
    #allocation11 [shape = 'u8[4096]{0}', space=vmem, size = 0x1000, scoped, tag = 'output window, operand 0, single buffered']
    %9 = vsyncpa [#allocation4], 0
    %10 = vsyncpa [#allocation7], 0
    %11 = vsyncpa [#allocation10], 0
    %12 = vsyncpa [#allocation5], 0
    // Predicated region
    $region2: #{tpu_custom_call.1} parent=1 // pred_check
      _
    $region3: #{tpu_custom_call.1} parent=1 // pred_check_branch
      %14 = sbr.rel (0) target = $region5
    $region4: #{tpu_custom_call.1} parent=1 // pred_region
      %s16 = ssub.s32 128, 128
      %17 = vsyncadd [#allocation4], %s16
      %s19 = sshll.u32 [#allocation3], 4
      %s20 = int_to_ptr.vmem [resolvable:$true] %s19
      %22 = dma.hbm_to_vmem [thread:$0]  %s0, 128, %s20, [#allocation4]
    $region5: #{tpu_custom_call.1} parent=1 // pred_fallthru
      _
    // Predicated region
    $region6: #{tpu_custom_call.1} parent=1 // pred_check
      _
    $region7: #{tpu_custom_call.1} parent=1 // pred_check_branch
      %24 = sbr.rel (0) target = $region9
    $region8: #{tpu_custom_call.1} parent=1 // pred_region
      %s26 = ssub.s32 512, 512
      %27 = vsyncadd [#allocation7], %s26
      %s28 = sshll.u32 [#allocation6], 4
      %s29 = int_to_ptr.vmem [resolvable:$true] %s28
      %34 = dma.hbm_to_vmem [thread:$0]  %s1, 512, %s29, [#allocation7], 128, 128, 8
    $region9: #{tpu_custom_call.1} parent=1 // pred_fallthru
      _
    // Predicated region
    $region10: #{tpu_custom_call.1} parent=1 // pred_check
      _
    $region11: #{tpu_custom_call.1} parent=1 // pred_check_branch
      %36 = sbr.rel (0) target = $region13
    $region12: #{tpu_custom_call.1} parent=1 // pred_region
      %s38 = ssub.s32 16, 16
      %39 = vsyncadd [#allocation7], %s38
      %s41 = sshll.u32 [#allocation8], 4
      %s42 = int_to_ptr.vmem [resolvable:$true] %s41
      %44 = dma.hbm_to_vmem [thread:$0]  %s2, 16, %s42, [#allocation7]
    $region13: #{tpu_custom_call.1} parent=1 // pred_fallthru
      _
    // Predicated region
    $region14: #{tpu_custom_call.1} parent=1 // pred_check
      _
    $region15: #{tpu_custom_call.1} parent=1 // pred_check_branch
      %46 = sbr.rel (0) target = $region17
    $region16: #{tpu_custom_call.1} parent=1 // pred_region
      %s48 = ssub.s32 16, 16
      %49 = vsyncadd [#allocation10], %s48
      %s51 = sshll.u32 [#allocation9], 4
      %s52 = int_to_ptr.vmem [resolvable:$true] %s51
      %54 = dma.hbm_to_vmem [thread:$0]  %s3, 16, %s52, [#allocation10]
    $region17: #{tpu_custom_call.1} parent=1 // pred_fallthru
      _
    // Predicated region
    $region18: #{tpu_custom_call.1} parent=1 // pred_check
      _
    $region19: #{tpu_custom_call.1} parent=1 // pred_check_branch
      %56 = sbr.rel (0) target = $region21
    $region20: #{tpu_custom_call.1} parent=1 // pred_region
      %57 = dma.done [#allocation4], 128
    $region21: #{tpu_custom_call.1} parent=1 // pred_fallthru
      _
    // Predicated region
    $region22: #{tpu_custom_call.1} parent=1 // pred_check
      _
    $region23: #{tpu_custom_call.1} parent=1 // pred_check_branch
      %59 = sbr.rel (0) target = $region25
    $region24: #{tpu_custom_call.1} parent=1 // pred_region
      %60 = dma.done [#allocation7], 512
    $region25: #{tpu_custom_call.1} parent=1 // pred_fallthru
      _
    // Predicated region
    $region26: #{tpu_custom_call.1} parent=1 // pred_check
      _
    $region27: #{tpu_custom_call.1} parent=1 // pred_check_branch
      %62 = sbr.rel (0) target = $region29
    $region28: #{tpu_custom_call.1} parent=1 // pred_region
      %63 = dma.done [#allocation7], 16
    $region29: #{tpu_custom_call.1} parent=1 // pred_fallthru
      _
    // Predicated region
    $region30: #{tpu_custom_call.1} parent=1 // pred_check
      _
    $region31: #{tpu_custom_call.1} parent=1 // pred_check_branch
      %65 = sbr.rel (0) target = $region33
    $region32: #{tpu_custom_call.1} parent=1 // pred_region
      %66 = dma.done [#allocation10], 16
    $region33: #{tpu_custom_call.1} parent=1 // pred_fallthru
      _
    %p67 = scmp.eq.s32.totalorder 0, 0
    // Predicated region
    $region34: #{tpu_custom_call.1} parent=1 // pred_check
      %p68 = pneg %p67
    $region35: #{tpu_custom_call.1} parent=1 // pred_check_branch
      %70 = sbr.rel (%p68) target = $region37
    $region36: #{tpu_custom_call.1} parent=1 // pred_region
      %71 = vst [vmem:[#allocation2] sm:$0xff] 0.0
    $region37: #{tpu_custom_call.1} parent=1 // pred_fallthru
      _
    %v72 = vld [vmem:[#allocation2] sm:$0xff]
    %v73 = vld [vmem:[#allocation3] sm:$0xff]
    %v74 = vld [vmem:[#allocation6] sm:$0xff]
    %v75 = vld [vmem:[#allocation6 + $0x8] sm:$0xff]
    %v76 = vld [vmem:[#allocation6 + $0x10] sm:$0xff]
    %v77 = vld [vmem:[#allocation6 + $0x18] sm:$0xff]
    %vm78 = vcmask 261120
    %v80 = vsel %vm78, %v73, 0
    %82 = vmatprep.subr.mxu0 0.0
    %83 = vmatpush1.msra.mxu0 %v74
    %84 = vmatprep.subr.mxu0 0.0
    %85 = vmatpush1.msra.mxu0 %v75
    %86 = vmatprep.subr.mxu0 0.0
    %87 = vmatpush1.msra.mxu0 %v76
    %88 = vmatprep.subr.mxu0 0.0
    %89 = vmatpush1.msra.mxu0 %v77
    %90 = vmatprep.subr.mxu0 0.0
    %91 = vmatpush1.msra.mxu0 0.0
    %92 = vmatprep.subr.mxu0 0.0
    %93 = vmatpush1.msra.mxu0 0.0
    %94 = vmatprep.subr.mxu0 0.0
    %95 = vmatpush1.msra.mxu0 0.0
    %96 = vmatprep.subr.mxu0 0.0
    %97 = vmatpush1.msra.mxu0 0.0
    %98 = vmatprep.subr.mxu0 0.0
    %99 = vmatpush1.msra.mxu0 0.0
    %100 = vmatprep.subr.mxu0 0.0
    %101 = vmatpush1.msra.mxu0 0.0
    %102 = vmatprep.subr.mxu0 0.0
    %103 = vmatpush1.msra.mxu0 0.0
    %104 = vmatprep.subr.mxu0 0.0
    %105 = vmatpush1.msra.mxu0 0.0
    %106 = vmatprep.subr.mxu0 0.0
    %107 = vmatpush1.msra.mxu0 0.0
    %108 = vmatprep.subr.mxu0 0.0
    %109 = vmatpush1.msra.mxu0 0.0
    %110 = vmatprep.subr.mxu0 0.0
    %111 = vmatpush1.msra.mxu0 0.0
    %112 = vmatprep.subr.mxu0 0.0
    %113 = vmatpush1.msra.mxu0 0.0
    %114 = vmatprep.subr.mxu0 0.0
    %115 = vmatpush1.msra.mxu0 0.0
    %116 = vmatprep.subr.mxu0 0.0
    %117 = vmatpush1.msra.mxu0 0.0
    %118 = vmatprep.subr.mxu0 0.0
    %119 = vmatpush1.msra.mxu0 0.0
    %120 = vmatprep.subr.mxu0 0.0
    %121 = vmatpush1.msra.mxu0 0.0
    %122 = vmatprep.subr.mxu0 0.0
    %123 = vmatpush1.msra.mxu0 0.0
    %124 = vmatprep.subr.mxu0 0.0
    %125 = vmatpush1.msra.mxu0 0.0
    %126 = vmatprep.subr.mxu0 0.0
    %127 = vmatpush1.msra.mxu0 0.0
    %128 = vmatprep.subr.mxu0 0.0
    %129 = vmatpush1.msra.mxu0 0.0
    %130 = vmatprep.subr.mxu0 0.0
    %131 = vmatpush1.msra.mxu0 0.0
    %132 = vmatprep.subr.mxu0 0.0
    %133 = vmatpush1.msra.mxu0 0.0
    %134 = vmatprep.subr.mxu0 0.0
    %135 = vmatpush1.msra.mxu0 0.0
    %136 = vmatprep.subr.mxu0 0.0
    %137 = vmatpush1.msra.mxu0 0.0
    %138 = vmatprep.subr.mxu0 0.0
    %139 = vmatpush1.msra.mxu0 0.0
    %140 = vmatprep.subr.mxu0 0.0
    %141 = vmatpush1.msra.mxu0 0.0
    %142 = vmatprep.subr.mxu0 0.0
    %143 = vmatpush1.msra.mxu0 0.0
    %144 = vmatprep.subr.mxu0 0.0
    %145 = vmatpush1.msra.mxu0 0.0
    %146 = vmatprep.mubr.f32.mxu0 0.0
    %147 = vmatmul.mubr.f32.gmra.mrb[0].mxu0 %v80
    %v148 = vpop.f32.mrb[0].mxu0
    %v149 = vadd.f32 0.0, %v148
    %v150 = vpop.f32.mrb[0].mxu0
    %151 = vdwg.mxu0
    %v152 = vadd.f32 %v72, %v149
    %153 = vst [vmem:[#allocation2] sm:$0xff] %v152
    // Predicated region
    $region38: #{tpu_custom_call.1} parent=1 // pred_check
      %p154 = pneg %p67
    $region39: #{tpu_custom_call.1} parent=1 // pred_check_branch
      %156 = sbr.rel (%p154) target = $region41
    $region40: #{tpu_custom_call.1} parent=1 // pred_region
      %v157 = vld [vmem:[#allocation2] sm:$0xff]
      %v158 = vrot.slane %v157, 4
      %v159 = vadd.f32 %v157, %v158
      %v160 = vrot.slane %v159, 2
      %v161 = vadd.f32 %v159, %v160
      %v162 = vrot.slane %v161, 1
      %v163 = vadd.f32 %v161, %v162
      %v164 = vmul.f32 %v157, %v157
      %v165 = vrot.slane %v164, 4
      %v166 = vadd.f32 %v164, %v165
      %v167 = vrot.slane %v166, 2
      %v168 = vadd.f32 %v166, %v167
      %v169 = vrot.slane %v168, 1
      %v170 = vadd.f32 %v168, %v169
      %v171 = vmul.f32 %v163, 0.125
      %v172 = vmul.f32 %v170, 0.125
      %v173 = vmul.f32 %v171, %v171
      %v174 = vsub.f32 %v172, %v173
      %v175 = vld [vmem:[#allocation8] sm:$0x1]
      %v176 = vadd.f32 %v174, 1e-05
      %v177 = vrsqrt.pop %v176
      %v178 = vmul.f32 %v175, %v177
      %v179 = vld [vmem:[#allocation9] sm:$0x1]
      %v180 = vmul.f32 %v171, %v178
      %v181 = vsub.f32 %v179, %v180
      %v183 = vlaneseq
      %v184 = vshrl.u32 %v183, 7
      %v185 = vsub.s32 0, %v184
      %v186 = vrot.slane %v178, %v185
      %v188 = vmul.f32 %v157, %v186
      %v190 = vlaneseq
      %v191 = vshrl.u32 %v190, 7
      %v192 = vsub.s32 0, %v191
      %v193 = vrot.slane %v181, %v192
      %v195 = vadd.f32 %v188, %v193
      %v196 = vmax.f32 %v195, 0.0
      %197 = vst [vmem:[#allocation11] sm:$0xff] %v196
    $region41: #{tpu_custom_call.1} parent=1 // pred_fallthru
      _
    // Predicated region
    $region42: #{tpu_custom_call.1} parent=1 // pred_check
      _
    $region43: #{tpu_custom_call.1} parent=1 // pred_check_branch
      %199 = sbr.rel (0) target = $region45
    $region44: #{tpu_custom_call.1} parent=1 // pred_region
      %s201 = ssub.s32 128, 128
      %202 = vsyncadd [#allocation5], %s201
      %s204 = sshll.u32 [#allocation11], 4
      %s205 = int_to_ptr.vmem [resolvable:$true] %s204
      %207 = dma.vmem_to_hbm [thread:$0]  %s205, 128, %s4, [#allocation5]
    $region45: #{tpu_custom_call.1} parent=1 // pred_fallthru
      _
    // Predicated region
    $region46: #{tpu_custom_call.1} parent=1 // pred_check
      _
    $region47: #{tpu_custom_call.1} parent=1 // pred_check_branch
      %209 = sbr.rel (0) target = $region49
    $region48: #{tpu_custom_call.1} parent=1 // pred_region
      %210 = dma.done [#allocation5], 128
    $region49: #{tpu_custom_call.1} parent=1 // pred_fallthru
      _
    %211 = vsyncpa [#allocation4], 1
    %212 = vsyncpa [#allocation7], 1
    %213 = vsyncpa [#allocation10], 1
    %214 = vsyncpa [#allocation5], 1

</llo_original>
